<compile_context>
chip_gen: v7x
topology: tpu7x:2x2x1
jax: 0.10.0
libtpu: 0.0.40
codegen_flags: <defaults>
</compile_context>

<pallas_src>
import functools

import jax
import jax.numpy as jnp
import numpy as np
from jax.experimental import pallas as pl
from jax.experimental.pallas import tpu as pltpu

# ---------------- problem sizes (small, consistent with the module) ----------
N = 8            # number of nodes (original model uses 100; small for the test)
F_X = 3          # node feature dim   (mlp2 in = 3 + 32 = 35)
F_E = 2          # edge feature dim   (mlp1 in = 3 + 2  = 5)
H1A = 16         # mlp1 hidden
H1B = 32         # mlp1 output (message dim)
H2A = 16         # mlp2 hidden
NUM_LAYERS = 3

# ---- packed-parameter layout: a single [W_ROWS, W_COLS] f32 operand ----------
R_W1B = 0                 # rows  0:16, cols 0:32   mlp1 layer2 weight [16, 32]
R_W2AA = 16               # rows 16:48, cols 0:16   mlp2 layer1 weight, aggr part [32, 16]
R_W1AX = 48               # rows 48:51, cols 0:16   mlp1 layer1 weight, x_j  part [3, 16]
R_W1AE = 51               # rows 51:53, cols 0:16   mlp1 layer1 weight, e_ij part [2, 16]
R_W2AX = 53               # rows 53:56, cols 0:16   mlp2 layer1 weight, x_i  part [3, 16]
R_B1A = 56                # row  56,    cols 0:16   mlp1 layer1 bias
R_B1B = 57                # row  57,    cols 0:32   mlp1 layer2 bias
R_B2A = 58                # row  58,    cols 0:16   mlp2 layer1 bias
R_W2BT = 59               # row  59,    cols 0:16   mlp2 layer2 weight (transposed)
R_B2B = 60                # row  60,    col  0      mlp2 layer2 bias (scalar)
W_ROWS, W_COLS = 64, 32


# ------------------------------ Pallas kernel --------------------------------
def igcnet_kernel(x0_ref, eattr_ref, mask_ref, w_ref, out_ref):
    n = x0_ref.shape[0]
    e_cnt = n * n

    x0 = x0_ref[...]            # [n, 3]
    eattr = eattr_ref[...]      # [n, n, 2]   source-major: eattr[src, dst, :]
    mask = mask_ref[...]        # [n, n, 1]   1.0 where edge src->dst exists
    W = w_ref[...]              # [64, 32]    packed weights/biases

    # ---- unpack packed parameters (static slices, tiny) ---------------------
    w1b = W[R_W1B:R_W1B + H1A, :H1B]             # [16, 32]
    w2aa = W[R_W2AA:R_W2AA + H1B, :H2A]          # [32, 16]
    w1ax0 = W[R_W1AX + 0:R_W1AX + 1, :H1A]       # [1, 16] each
    w1ax1 = W[R_W1AX + 1:R_W1AX + 2, :H1A]
    w1ax2 = W[R_W1AX + 2:R_W1AX + 3, :H1A]
    w1ae0 = W[R_W1AE + 0:R_W1AE + 1, :H1A]
    w1ae1 = W[R_W1AE + 1:R_W1AE + 2, :H1A]
    w2ax0 = W[R_W2AX + 0:R_W2AX + 1, :H2A]
    w2ax1 = W[R_W2AX + 1:R_W2AX + 2, :H2A]
    w2ax2 = W[R_W2AX + 2:R_W2AX + 3, :H2A]
    b1a = W[R_B1A:R_B1A + 1, :H1A]
    b1b = W[R_B1B:R_B1B + 1, :H1B]
    b2a = W[R_B2A:R_B2A + 1, :H2A]
    w2bt = W[R_W2BT:R_W2BT + 1, :H1A]
    b2b = W[R_B2B:R_B2B + 1, 0:1]

    dot = functools.partial(jnp.dot, preferred_element_type=jnp.float32)

    # ---- layer-invariant precompute (hoisted out of the 3-layer loop) -------
    # x[:, :2] never changes across layers (update keeps x[:, :-1]); only the
    # last column ("comb") is carried.  K<=2 node-level contractions stay on
    # the VPU as broadcast multiply-adds (no tiny-K MXU ops, no gather matrix).
    xa, xb = x0[:, 0:1], x0[:, 1:2]
    node_fixed1 = xa * w1ax0 + xb * w1ax1                      # [n, 16]
    node_fixed2 = xa * w2ax0 + xb * w2ax1 + b2a                # [n, 16]
    edge_fixed1 = (eattr[:, :, 0:1] * w1ae0 +
                   eattr[:, :, 1:2] * w1ae1 + b1a)             # [n, n, 16], once

    def layer(_, comb):                                        # comb: [n, 1]
        # --- message: mlp1(cat(x_j, e_ij)); only the rank-1 comb term varies
        node1 = node_fixed1 + comb * w1ax2                     # [n, 16] = x @ w1ax
        h1 = jnp.maximum(node1[:, None, :] + edge_fixed1, 0.0)            # [n, n, 16]
        msg = jnp.maximum(dot(h1.reshape(e_cnt, H1A), w1b) + b1b, 0.0)    # [n*n, 32]
        # Non-existent edges (incl. self loops) -> 0.  This reproduces
        # torch_scatter 'max' with a 0-filled output ONLY because the final
        # ReLU guarantees msg >= 0; keep that ReLU if mlp1 ever changes.
        msg = msg.reshape(n, n, H1B) * mask                    # [src, dst, 32]

        # --- aggregate: per-destination max over sources (leading axis).
        # Each msg[j] is a full, aligned (n, 32) slab (leading-index select,
        # no relayout), so this accumulate is exactly what a leading-axis
        # jnp.max reduction lowers to — no misaligned sublane slices.
        aggr = jnp.zeros((n, H1B), jnp.float32)
        for j in range(n):
            aggr = jnp.maximum(aggr, msg[j])

        # --- update: mlp2(cat(x_i, aggr)) -> sigmoid
        node2 = node_fixed2 + comb * w2ax2                     # [n, 16] = x@w2ax + b2a
        h2 = jnp.maximum(node2 + dot(aggr, w2aa), 0.0)         # [n, 16]
        logit = jnp.sum(h2 * w2bt, axis=-1, keepdims=True) + b2b          # [n, 1]
        return 1.0 / (1.0 + jnp.exp(-logit))                   # exp on the EUP

    comb = jax.lax.fori_loop(0, NUM_LAYERS, layer, x0[:, F_X - 1:F_X])

    # x_out = cat(x0[:, :2], comb)   (lane mask, no in-kernel concat)
    col = jax.lax.broadcasted_iota(jnp.int32, (n, F_X), 1)
    out_ref[...] = jnp.where(col < F_X - 1, x0, comb)


def igcnet_pallas(x0, eattr3, mask3, wpack):
    n = x0.shape[0]

    def vmem_spec(shape):
        zeros = (0,) * len(shape)          # bound now -> no late-binding lambda bug
        return pl.BlockSpec(shape, lambda i, _z=zeros: _z)

    # TODO(synk): at production N=100, split into one pallas_call per layer and
    # grid over destination-node tiles marked "parallel" to use both v7x
    # TensorCores; at this size a single resident invocation is cheapest.
    return pl.pallas_call(
        igcnet_kernel,
        out_shape=jax.ShapeDtypeStruct((n, F_X), jnp.float32),
        grid=(1,),
        in_specs=[vmem_spec(x0.shape), vmem_spec(eattr3.shape),
                  vmem_spec(mask3.shape), vmem_spec(wpack.shape)],
        out_specs=vmem_spec((n, F_X)),
        compiler_params=pltpu.CompilerParams(
            dimension_semantics=("arbitrary",),
            vmem_limit_bytes=64 * 1024 * 1024),
    )(x0, eattr3, mask3, wpack)


# --------------------------- pure-JAX reference -------------------------------
def igcnet_ref(x, edge_index, edge_attr, params):
    w1a, b1a, w1b, b1b, w2a, b2a, w2b, b2b = params
    src, dst = edge_index
    n = x.shape[0]
    for _ in range(NUM_LAYERS):
        xj = x[src]
        h1 = jnp.maximum(jnp.concatenate([xj, edge_attr], 1) @ w1a + b1a, 0.0)
        msg = jnp.maximum(h1 @ w1b + b1b, 0.0)
        aggr = jnp.zeros((n, H1B), jnp.float32).at[dst].max(msg)   # 0-filled scatter-max
        h2 = jnp.maximum(jnp.concatenate([x, aggr], 1) @ w2a + b2a, 0.0)
        comb = 1.0 / (1.0 + jnp.exp(-(h2 @ w2b + b2b)))
        x = jnp.concatenate([x[:, :F_X - 1], comb], axis=1)
    return x


# ------------------------------ parameter init --------------------------------
def init_linear(key, fan_in, fan_out):
    kw, kb = jax.random.split(key)
    bound = 1.0 / np.sqrt(fan_in)
    w = jax.random.uniform(kw, (fan_in, fan_out), jnp.float32, -bound, bound)
    b = jax.random.uniform(kb, (1, fan_out), jnp.float32, -bound, bound)
    return w, b


def make_params(key):
    k1, k2, k3, k4 = jax.random.split(key, 4)
    w1a, b1a = init_linear(k1, F_X + F_E, H1A)     # mlp1 layer 1: 5 -> 16
    w1b, b1b = init_linear(k2, H1A, H1B)           # mlp1 layer 2: 16 -> 32
    w2a, b2a = init_linear(k3, F_X + H1B, H2A)     # mlp2 layer 1: 35 -> 16
    w2b, b2b = init_linear(k4, H2A, 1)             # mlp2 layer 2: 16 -> 1
    return (w1a, b1a, w1b, b1b, w2a, b2a, w2b, b2b)


def pack_params(params):
    """Pack all 10 weight/bias tensors into one [64, 32] VMEM operand (1 DMA)."""
    w1a, b1a, w1b, b1b, w2a, b2a, w2b, b2b = params
    Wp = np.zeros((W_ROWS, W_COLS), np.float32)
    Wp[R_W1B:R_W1B + H1A, :H1B] = np.asarray(w1b)
    Wp[R_W2AA:R_W2AA + H1B, :H2A] = np.asarray(w2a[F_X:, :])
    Wp[R_W1AX:R_W1AX + F_X, :H1A] = np.asarray(w1a[:F_X, :])
    Wp[R_W1AE:R_W1AE + F_E, :H1A] = np.asarray(w1a[F_X:, :])
    Wp[R_W2AX:R_W2AX + F_X, :H2A] = np.asarray(w2a[:F_X, :])
    Wp[R_B1A, :H1A] = np.asarray(b1a[0])
    Wp[R_B1B, :H1B] = np.asarray(b1b[0])
    Wp[R_B2A, :H2A] = np.asarray(b2a[0])
    Wp[R_W2BT, :H1A] = np.asarray(w2b[:, 0])
    Wp[R_B2B, 0] = float(b2b[0, 0])
    return jnp.asarray(Wp)


# --------------------------------- glue ---------------------------------------
def densify_edges(edge_index, edge_attr, n):
    """Sparse (edge_index, edge_attr) -> source-major dense [n, n, F_E] + mask."""
    src, dst = edge_index
    eattr3 = jnp.zeros((n, n, F_E), jnp.float32).at[src, dst].set(edge_attr)
    mask3 = jnp.zeros((n, n, 1), jnp.float32).at[src, dst, 0].set(1.0)
    return eattr3, mask3


if __name__ == "__main__":
    key = jax.random.PRNGKey(0)
    kx, ke, kp = jax.random.split(key, 3)

    # fully connected directed graph without self loops (as in IGCNet usage)
    src = np.array([j for j in range(N) for i in range(N) if i != j], np.int32)
    dst = np.array([i for j in range(N) for i in range(N) if i != j], np.int32)
    edge_index = (jnp.asarray(src), jnp.asarray(dst))

    x0 = jax.random.uniform(kx, (N, F_X), jnp.float32)
    edge_attr = jax.random.uniform(ke, (len(src), F_E), jnp.float32)
    params = make_params(kp)

    eattr3, mask3 = densify_edges(edge_index, edge_attr, N)
    wpack = pack_params(params)

    out = igcnet_pallas(x0, eattr3, mask3, wpack)
    out = jax.block_until_ready(out)

    ref = igcnet_ref(x0, edge_index, edge_attr, params)
    np.testing.assert_allclose(np.asarray(out), np.asarray(ref),
                               rtol=1e-5, atol=1e-5)
    print("KERNEL_OK")
</pallas_src>

<mosaic_0001>
module attributes {stable_mosaic.version = 11 : i64} {
  func.func @igcnet_kernel(%arg0: i32, %arg1: memref<8x3xf32, #tpu.memory_space<vmem>>, %arg2: memref<8x8x2xf32, #tpu.memory_space<vmem>>, %arg3: memref<8x8x1xf32, #tpu.memory_space<vmem>>, %arg4: memref<64x32xf32, #tpu.memory_space<vmem>>, %arg5: memref<8x3xf32, #tpu.memory_space<vmem>>) attributes {dimension_semantics = [#tpu.dimension_semantics<arbitrary>], iteration_bounds = array<i64: 1>, scalar_prefetch = 0 : i64, scratch_operands = 0 : i64, tpu.core_type = #tpu.core_type<tc>, window_params = [{pipeline_mode = #tpu.pipeline_mode<synchronous>, transform_indices = @transform_0, window_bounds = array<i64: 8, 3>}, {pipeline_mode = #tpu.pipeline_mode<synchronous>, transform_indices = @transform_1, window_bounds = array<i64: 8, 8, 2>}, {pipeline_mode = #tpu.pipeline_mode<synchronous>, transform_indices = @transform_2, window_bounds = array<i64: 8, 8, 1>}, {pipeline_mode = #tpu.pipeline_mode<synchronous>, transform_indices = @transform_3, window_bounds = array<i64: 64, 32>}, {pipeline_mode = #tpu.pipeline_mode<synchronous>, transform_indices = @transform_4, window_bounds = array<i64: 8, 3>}]} {
    %c0 = arith.constant 0 : index
    %c0_0 = arith.constant 0 : index
    %0 = vector.load %arg1[%c0, %c0_0] : memref<8x3xf32, #tpu.memory_space<vmem>>, vector<8x3xf32>
    %c0_1 = arith.constant 0 : index
    %c0_2 = arith.constant 0 : index
    %c0_3 = arith.constant 0 : index
    %1 = vector.load %arg2[%c0_1, %c0_2, %c0_3] : memref<8x8x2xf32, #tpu.memory_space<vmem>>, vector<8x8x2xf32>
    %c0_4 = arith.constant 0 : index
    %c0_5 = arith.constant 0 : index
    %c0_6 = arith.constant 0 : index
    %2 = vector.load %arg3[%c0_4, %c0_5, %c0_6] : memref<8x8x1xf32, #tpu.memory_space<vmem>>, vector<8x8x1xf32>
    %c0_7 = arith.constant 0 : index
    %c0_8 = arith.constant 0 : index
    %3 = vector.load %arg4[%c0_7, %c0_8] : memref<64x32xf32, #tpu.memory_space<vmem>>, vector<64x32xf32>
    %4 = vector.extract_strided_slice %3 {offsets = [0, 0], sizes = [16, 32], strides = [1, 1]} : vector<64x32xf32> to vector<16x32xf32>
    %5 = vector.extract_strided_slice %3 {offsets = [16, 0], sizes = [32, 16], strides = [1, 1]} : vector<64x32xf32> to vector<32x16xf32>
    %6 = vector.extract_strided_slice %3 {offsets = [48, 0], sizes = [1, 16], strides = [1, 1]} : vector<64x32xf32> to vector<1x16xf32>
    %7 = vector.extract_strided_slice %3 {offsets = [49, 0], sizes = [1, 16], strides = [1, 1]} : vector<64x32xf32> to vector<1x16xf32>
    %8 = vector.extract_strided_slice %3 {offsets = [50, 0], sizes = [1, 16], strides = [1, 1]} : vector<64x32xf32> to vector<1x16xf32>
    %9 = vector.extract_strided_slice %3 {offsets = [51, 0], sizes = [1, 16], strides = [1, 1]} : vector<64x32xf32> to vector<1x16xf32>
    %10 = vector.extract_strided_slice %3 {offsets = [52, 0], sizes = [1, 16], strides = [1, 1]} : vector<64x32xf32> to vector<1x16xf32>
    %11 = vector.extract_strided_slice %3 {offsets = [53, 0], sizes = [1, 16], strides = [1, 1]} : vector<64x32xf32> to vector<1x16xf32>
    %12 = vector.extract_strided_slice %3 {offsets = [54, 0], sizes = [1, 16], strides = [1, 1]} : vector<64x32xf32> to vector<1x16xf32>
    %13 = vector.extract_strided_slice %3 {offsets = [55, 0], sizes = [1, 16], strides = [1, 1]} : vector<64x32xf32> to vector<1x16xf32>
    %14 = vector.extract_strided_slice %3 {offsets = [56, 0], sizes = [1, 16], strides = [1, 1]} : vector<64x32xf32> to vector<1x16xf32>
    %15 = vector.extract_strided_slice %3 {offsets = [57, 0], sizes = [1, 32], strides = [1, 1]} : vector<64x32xf32> to vector<1x32xf32>
    %16 = vector.extract_strided_slice %3 {offsets = [58, 0], sizes = [1, 16], strides = [1, 1]} : vector<64x32xf32> to vector<1x16xf32>
    %17 = vector.extract_strided_slice %3 {offsets = [59, 0], sizes = [1, 16], strides = [1, 1]} : vector<64x32xf32> to vector<1x16xf32>
    %18 = vector.extract_strided_slice %3 {offsets = [60, 0], sizes = [1, 1], strides = [1, 1]} : vector<64x32xf32> to vector<1x1xf32>
    %19 = vector.extract_strided_slice %0 {offsets = [0, 0], sizes = [8, 1], strides = [1, 1]} : vector<8x3xf32> to vector<8x1xf32>
    %20 = vector.extract_strided_slice %0 {offsets = [0, 1], sizes = [8, 1], strides = [1, 1]} : vector<8x3xf32> to vector<8x1xf32>
    %21 = vector.broadcast %19 : vector<8x1xf32> to vector<8x16xf32>
    %22 = vector.broadcast %6 : vector<1x16xf32> to vector<8x16xf32>
    %23 = arith.mulf %21, %22 : vector<8x16xf32>
    %24 = vector.broadcast %20 : vector<8x1xf32> to vector<8x16xf32>
    %25 = vector.broadcast %7 : vector<1x16xf32> to vector<8x16xf32>
    %26 = arith.mulf %24, %25 : vector<8x16xf32>
    %27 = arith.addf %23, %26 : vector<8x16xf32>
    %28 = vector.broadcast %19 : vector<8x1xf32> to vector<8x16xf32>
    %29 = vector.broadcast %11 : vector<1x16xf32> to vector<8x16xf32>
    %30 = arith.mulf %28, %29 : vector<8x16xf32>
    %31 = vector.broadcast %20 : vector<8x1xf32> to vector<8x16xf32>
    %32 = vector.broadcast %12 : vector<1x16xf32> to vector<8x16xf32>
    %33 = arith.mulf %31, %32 : vector<8x16xf32>
    %34 = arith.addf %30, %33 : vector<8x16xf32>
    %35 = vector.broadcast %16 : vector<1x16xf32> to vector<8x16xf32>
    %36 = arith.addf %34, %35 : vector<8x16xf32>
    %37 = vector.extract_strided_slice %1 {offsets = [0, 0, 0], sizes = [8, 8, 1], strides = [1, 1, 1]} : vector<8x8x2xf32> to vector<8x8x1xf32>
    %38 = vector.shape_cast %9 : vector<1x16xf32> to vector<1x1x16xf32>
    %39 = vector.broadcast %37 : vector<8x8x1xf32> to vector<8x8x16xf32>
    %40 = vector.broadcast %38 : vector<1x1x16xf32> to vector<8x8x16xf32>
    %41 = arith.mulf %39, %40 : vector<8x8x16xf32>
    %42 = vector.extract_strided_slice %1 {offsets = [0, 0, 1], sizes = [8, 8, 1], strides = [1, 1, 1]} : vector<8x8x2xf32> to vector<8x8x1xf32>
    %43 = vector.shape_cast %10 : vector<1x16xf32> to vector<1x1x16xf32>
    %44 = vector.broadcast %42 : vector<8x8x1xf32> to vector<8x8x16xf32>
    %45 = vector.broadcast %43 : vector<1x1x16xf32> to vector<8x8x16xf32>
    %46 = arith.mulf %44, %45 : vector<8x8x16xf32>
    %47 = arith.addf %41, %46 : vector<8x8x16xf32>
    %48 = vector.shape_cast %14 : vector<1x16xf32> to vector<1x1x16xf32>
    %49 = vector.broadcast %48 : vector<1x1x16xf32> to vector<8x8x16xf32>
    %50 = arith.addf %47, %49 : vector<8x8x16xf32>
    %51 = vector.extract_strided_slice %0 {offsets = [0, 2], sizes = [8, 1], strides = [1, 1]} : vector<8x3xf32> to vector<8x1xf32>
    %c0_i32 = arith.constant 0 : i32
    %c3_i32 = arith.constant 3 : i32
    %52 = arith.addi %c0_i32, %c3_i32 : i32
    %c1_i32 = arith.constant 1 : i32
    %53 = scf.for %arg6 = %c0_i32 to %52 step %c1_i32 iter_args(%arg7 = %51) -> (vector<8x1xf32>)  : i32 {
      %61 = vector.broadcast %arg7 : vector<8x1xf32> to vector<8x16xf32>
      %62 = vector.broadcast %8 : vector<1x16xf32> to vector<8x16xf32>
      %63 = arith.mulf %61, %62 : vector<8x16xf32>
      %64 = arith.addf %27, %63 : vector<8x16xf32>
      %65 = vector.shape_cast %64 : vector<8x16xf32> to vector<8x1x16xf32>
      %66 = vector.broadcast %65 : vector<8x1x16xf32> to vector<8x8x16xf32>
      %67 = arith.addf %66, %50 : vector<8x8x16xf32>
      %cst = arith.constant 0.000000e+00 : f32
      %68 = vector.broadcast %cst : f32 to vector<8x8x16xf32>
      %69 = arith.maximumf %67, %68 : vector<8x8x16xf32>
      %70 = vector.shape_cast %69 : vector<8x8x16xf32> to vector<64x16xf32>
      %cst_11 = arith.constant dense<0.000000e+00> : vector<64x32xf32>
      %71 = tpu.matmul %70, %4, %cst_11 {dimension_numbers = #tpu.dot_dimension_numbers<[1], [0], [0], [1], [0, 0, 1, 1], [], []>} : vector<64x16xf32>, vector<16x32xf32>, vector<64x32xf32> -> vector<64x32xf32>
      %72 = vector.broadcast %15 : vector<1x32xf32> to vector<64x32xf32>
      %73 = arith.addf %71, %72 : vector<64x32xf32>
      %cst_12 = arith.constant 0.000000e+00 : f32
      %74 = vector.broadcast %cst_12 : f32 to vector<64x32xf32>
      %75 = arith.maximumf %73, %74 : vector<64x32xf32>
      %76 = vector.shape_cast %75 : vector<64x32xf32> to vector<8x8x32xf32>
      %77 = vector.broadcast %2 : vector<8x8x1xf32> to vector<8x8x32xf32>
      %78 = arith.mulf %76, %77 : vector<8x8x32xf32>
      %cst_13 = arith.constant 0.000000e+00 : f32
      %79 = vector.broadcast %cst_13 : f32 to vector<8x32xf32>
      %80 = vector.extract_strided_slice %78 {offsets = [0, 0, 0], sizes = [1, 8, 32], strides = [1, 1, 1]} : vector<8x8x32xf32> to vector<1x8x32xf32>
      %81 = vector.shape_cast %80 : vector<1x8x32xf32> to vector<8x32xf32>
      %82 = arith.maximumf %79, %81 : vector<8x32xf32>
      %83 = vector.extract_strided_slice %78 {offsets = [1, 0, 0], sizes = [1, 8, 32], strides = [1, 1, 1]} : vector<8x8x32xf32> to vector<1x8x32xf32>
      %84 = vector.shape_cast %83 : vector<1x8x32xf32> to vector<8x32xf32>
      %85 = arith.maximumf %82, %84 : vector<8x32xf32>
      %86 = vector.extract_strided_slice %78 {offsets = [2, 0, 0], sizes = [1, 8, 32], strides = [1, 1, 1]} : vector<8x8x32xf32> to vector<1x8x32xf32>
      %87 = vector.shape_cast %86 : vector<1x8x32xf32> to vector<8x32xf32>
      %88 = arith.maximumf %85, %87 : vector<8x32xf32>
      %89 = vector.extract_strided_slice %78 {offsets = [3, 0, 0], sizes = [1, 8, 32], strides = [1, 1, 1]} : vector<8x8x32xf32> to vector<1x8x32xf32>
      %90 = vector.shape_cast %89 : vector<1x8x32xf32> to vector<8x32xf32>
      %91 = arith.maximumf %88, %90 : vector<8x32xf32>
      %92 = vector.extract_strided_slice %78 {offsets = [4, 0, 0], sizes = [1, 8, 32], strides = [1, 1, 1]} : vector<8x8x32xf32> to vector<1x8x32xf32>
      %93 = vector.shape_cast %92 : vector<1x8x32xf32> to vector<8x32xf32>
      %94 = arith.maximumf %91, %93 : vector<8x32xf32>
      %95 = vector.extract_strided_slice %78 {offsets = [5, 0, 0], sizes = [1, 8, 32], strides = [1, 1, 1]} : vector<8x8x32xf32> to vector<1x8x32xf32>
      %96 = vector.shape_cast %95 : vector<1x8x32xf32> to vector<8x32xf32>
      %97 = arith.maximumf %94, %96 : vector<8x32xf32>
      %98 = vector.extract_strided_slice %78 {offsets = [6, 0, 0], sizes = [1, 8, 32], strides = [1, 1, 1]} : vector<8x8x32xf32> to vector<1x8x32xf32>
      %99 = vector.shape_cast %98 : vector<1x8x32xf32> to vector<8x32xf32>
      %100 = arith.maximumf %97, %99 : vector<8x32xf32>
      %101 = vector.extract_strided_slice %78 {offsets = [7, 0, 0], sizes = [1, 8, 32], strides = [1, 1, 1]} : vector<8x8x32xf32> to vector<1x8x32xf32>
      %102 = vector.shape_cast %101 : vector<1x8x32xf32> to vector<8x32xf32>
      %103 = arith.maximumf %100, %102 : vector<8x32xf32>
      %104 = vector.broadcast %arg7 : vector<8x1xf32> to vector<8x16xf32>
      %105 = vector.broadcast %13 : vector<1x16xf32> to vector<8x16xf32>
      %106 = arith.mulf %104, %105 : vector<8x16xf32>
      %107 = arith.addf %36, %106 : vector<8x16xf32>
      %cst_14 = arith.constant dense<0.000000e+00> : vector<8x16xf32>
      %108 = tpu.matmul %103, %5, %cst_14 {dimension_numbers = #tpu.dot_dimension_numbers<[1], [0], [0], [1], [0, 0, 1, 1], [], []>} : vector<8x32xf32>, vector<32x16xf32>, vector<8x16xf32> -> vector<8x16xf32>
      %109 = arith.addf %107, %108 : vector<8x16xf32>
      %cst_15 = arith.constant 0.000000e+00 : f32
      %110 = vector.broadcast %cst_15 : f32 to vector<8x16xf32>
      %111 = arith.maximumf %109, %110 : vector<8x16xf32>
      %112 = vector.broadcast %17 : vector<1x16xf32> to vector<8x16xf32>
      %113 = arith.mulf %111, %112 : vector<8x16xf32>
      %cst_16 = arith.constant dense<0.000000e+00> : vector<8xf32>
      %114 = vector.multi_reduction <add>, %113, %cst_16 [1] : vector<8x16xf32> to vector<8xf32>
      %115 = vector.shape_cast %114 : vector<8xf32> to vector<8x1xf32>
      %116 = vector.broadcast %18 : vector<1x1xf32> to vector<8x1xf32>
      %117 = arith.addf %115, %116 : vector<8x1xf32>
      %cst_17 = arith.constant 0.000000e+00 : f32
      %118 = vector.broadcast %cst_17 : f32 to vector<8x1xf32>
      %119 = arith.subf %118, %117 : vector<8x1xf32>
      %120 = math.exp %119 : vector<8x1xf32>
      %cst_18 = arith.constant 1.000000e+00 : f32
      %121 = vector.broadcast %cst_18 : f32 to vector<8x1xf32>
      %122 = arith.addf %121, %120 : vector<8x1xf32>
      %cst_19 = arith.constant 1.000000e+00 : f32
      %123 = vector.broadcast %cst_19 : f32 to vector<8x1xf32>
      %124 = arith.divf %123, %122 : vector<8x1xf32>
      scf.yield %124 : vector<8x1xf32>
    }
    %54 = tpu.iota {dimensions = array<i32: 1>} : vector<8x3xi32>
    %c2_i32 = arith.constant 2 : i32
    %55 = vector.broadcast %c2_i32 : i32 to vector<8x3xi32>
    %56 = arith.cmpi slt, %54, %55 : vector<8x3xi32>
    %57 = vector.shape_cast %53 : vector<8x1xf32> to vector<8x1xf32>
    %58 = vector.broadcast %57 : vector<8x1xf32> to vector<8x3xf32>
    %59 = arith.select %56, %0, %58 : vector<8x3xi1>, vector<8x3xf32>
    %c0_9 = arith.constant 0 : index
    %c0_10 = arith.constant 0 : index
    %60 = vector.load %arg5[%c0_9, %c0_10] : memref<8x3xf32, #tpu.memory_space<vmem>>, vector<8x3xf32>
    tpu.vector_store %arg5[%c0_9, %c0_10], %59 {strides = array<i32>} : memref<8x3xf32, #tpu.memory_space<vmem>>, vector<8x3xf32>,
    return
  }
  func.func @transform_0(%arg0: i32) -> (i32, i32) {
    %c0_i32 = arith.constant 0 : i32
    %c0_i32_0 = arith.constant 0 : i32
    %c0_i32_1 = arith.constant 0 : i32
    return %c0_i32, %c0_i32_0 : i32, i32
  }
  func.func @transform_1(%arg0: i32) -> (i32, i32, i32) {
    %c0_i32 = arith.constant 0 : i32
    %c0_i32_0 = arith.constant 0 : i32
    %c0_i32_1 = arith.constant 0 : i32
    %c0_i32_2 = arith.constant 0 : i32
    return %c0_i32, %c0_i32_0, %c0_i32_1 : i32, i32, i32
  }
  func.func @transform_2(%arg0: i32) -> (i32, i32, i32) {
    %c0_i32 = arith.constant 0 : i32
    %c0_i32_0 = arith.constant 0 : i32
    %c0_i32_1 = arith.constant 0 : i32
    %c0_i32_2 = arith.constant 0 : i32
    return %c0_i32, %c0_i32_0, %c0_i32_1 : i32, i32, i32
  }
  func.func @transform_3(%arg0: i32) -> (i32, i32) {
    %c0_i32 = arith.constant 0 : i32
    %c0_i32_0 = arith.constant 0 : i32
    %c0_i32_1 = arith.constant 0 : i32
    return %c0_i32, %c0_i32_0 : i32, i32
  }
  func.func @transform_4(%arg0: i32) -> (i32, i32) {
    %c0_i32 = arith.constant 0 : i32
    %c0_i32_0 = arith.constant 0 : i32
    %c0_i32_1 = arith.constant 0 : i32
    return %c0_i32, %c0_i32_0 : i32, i32
  }
}

</mosaic_0001>

<llo_original>
// kernel: tpu_custom_call.1
$region0: #{tpu_custom_call.1}
  #allocation0 [shape = 'u32[]', space=smem, size = 0x4, offset = 0x4, fixed_abs, tag = 'smem constant byte address 0x4 - core index']
  #allocation1 [shape = 'u32[144,128]{1,0:T(1,128)}', space=vmem, size = 0x12000, scoped, tag = 'internal scratch']
  %s0 = inlined_call_operand.hbm [shape: f32[8,3], index: 0, kind: input, shape index: {}]
  %s1 = inlined_call_operand.hbm [shape: f32[8,8,2], index: 1, kind: input, shape index: {}]
  %s2 = inlined_call_operand.hbm [shape: f32[8,8,1], index: 2, kind: input, shape index: {}]
  %s3 = inlined_call_operand.hbm [shape: f32[64,32], index: 3, kind: input, shape index: {}]
  %s4 = inlined_call_operand.hbm [shape: f32[8,3], index: 4, kind: output, shape index: {}]
  %s5 = sld [smem:[#allocation0]]
  $region49: #{tpu_custom_call.1} parent=0
    _
  %s7 = ssub.s32 1, %s5
  %s8 = scalar_select 0, %s7, %s5
  $region1: #{tpu_custom_call.1} parent=0
    #allocation2 [shape = 'u8[4096]{0}', space=vmem, size = 0x1000, scoped, tag = 'input window, operand 0, single buffered']
    #allocation3 [shape = 's32[1]{0}', space=sflag, size = 0x4, scoped, tag = 'scoped memory for tpu_custom_call.1']
    #allocation4 [shape = 's32[1]{0}', space=sflag, size = 0x4, scoped, tag = 'scoped memory for tpu_custom_call.1']
    #allocation5 [shape = 'u8[32768]{0}', space=vmem, size = 0x8000, scoped, tag = 'input window, operand 1, single buffered']
    #allocation6 [shape = 's32[1]{0}', space=sflag, size = 0x4, scoped, tag = 'scoped memory for tpu_custom_call.1']
    #allocation7 [shape = 'u8[32768]{0}', space=vmem, size = 0x8000, scoped, tag = 'input window, operand 2, single buffered']
    #allocation8 [shape = 'u8[32768]{0}', space=vmem, size = 0x8000, scoped, tag = 'input window, operand 3, single buffered']
    #allocation9 [shape = 's32[1]{0}', space=sflag, size = 0x4, scoped, tag = 'scoped memory for tpu_custom_call.1']
    #allocation10 [shape = 'u8[4096]{0}', space=vmem, size = 0x1000, scoped, tag = 'output window, operand 0, single buffered']
    %9 = vsyncpa [#allocation3], 0
    %10 = vsyncpa [#allocation6], 0
    %11 = vsyncpa [#allocation9], 0
    %12 = vsyncpa [#allocation4], 0
    // Predicated region
    $region2: #{tpu_custom_call.1} parent=1 // pred_check
      _
    $region3: #{tpu_custom_call.1} parent=1 // pred_check_branch
      %14 = sbr.rel (0) target = $region5
    $region4: #{tpu_custom_call.1} parent=1 // pred_region
      %s16 = ssub.s32 128, 128
      %17 = vsyncadd [#allocation3], %s16
      %s19 = sshll.u32 [#allocation2], 4
      %s20 = int_to_ptr.vmem [resolvable:$true] %s19
      %22 = dma.hbm_to_vmem [thread:$0]  %s0, 128, %s20, [#allocation3]
    $region5: #{tpu_custom_call.1} parent=1 // pred_fallthru
      _
    // Predicated region
    $region6: #{tpu_custom_call.1} parent=1 // pred_check
      _
    $region7: #{tpu_custom_call.1} parent=1 // pred_check_branch
      %24 = sbr.rel (0) target = $region9
    $region8: #{tpu_custom_call.1} parent=1 // pred_region
      %s26 = ssub.s32 1024, 1024
      %27 = vsyncadd [#allocation6], %s26
      %s28 = sshll.u32 [#allocation5], 4
      %s29 = int_to_ptr.vmem [resolvable:$true] %s28
      %34 = dma.hbm_to_vmem [thread:$0]  %s1, 1024, %s29, [#allocation6], 128, 128, 8
    $region9: #{tpu_custom_call.1} parent=1 // pred_fallthru
      _
    // Predicated region
    $region10: #{tpu_custom_call.1} parent=1 // pred_check
      _
    $region11: #{tpu_custom_call.1} parent=1 // pred_check_branch
      %36 = sbr.rel (0) target = $region13
    $region12: #{tpu_custom_call.1} parent=1 // pred_region
      %s38 = ssub.s32 1024, 1024
      %39 = vsyncadd [#allocation6], %s38
      %s40 = sshll.u32 [#allocation7], 4
      %s41 = int_to_ptr.vmem [resolvable:$true] %s40
      %46 = dma.hbm_to_vmem [thread:$0]  %s2, 1024, %s41, [#allocation6], 128, 128, 8
    $region13: #{tpu_custom_call.1} parent=1 // pred_fallthru
      _
    // Predicated region
    $region14: #{tpu_custom_call.1} parent=1 // pred_check
      _
    $region15: #{tpu_custom_call.1} parent=1 // pred_check_branch
      %48 = sbr.rel (0) target = $region17
    $region16: #{tpu_custom_call.1} parent=1 // pred_region
      %s50 = ssub.s32 1024, 1024
      %51 = vsyncadd [#allocation9], %s50
      %s52 = sshll.u32 [#allocation8], 4
      %s53 = int_to_ptr.vmem [resolvable:$true] %s52
      %58 = dma.hbm_to_vmem [thread:$0]  %s3, 1024, %s53, [#allocation9], 128, 128, 8
    $region17: #{tpu_custom_call.1} parent=1 // pred_fallthru
      _
    // Predicated region
    $region18: #{tpu_custom_call.1} parent=1 // pred_check
      _
    $region19: #{tpu_custom_call.1} parent=1 // pred_check_branch
      %60 = sbr.rel (0) target = $region21
    $region20: #{tpu_custom_call.1} parent=1 // pred_region
      %61 = dma.done [#allocation3], 128
    $region21: #{tpu_custom_call.1} parent=1 // pred_fallthru
      _
    // Predicated region
    $region22: #{tpu_custom_call.1} parent=1 // pred_check
      _
    $region23: #{tpu_custom_call.1} parent=1 // pred_check_branch
      %63 = sbr.rel (0) target = $region25
    $region24: #{tpu_custom_call.1} parent=1 // pred_region
      %64 = dma.done [#allocation6], 1024
    $region25: #{tpu_custom_call.1} parent=1 // pred_fallthru
      _
    // Predicated region
    $region26: #{tpu_custom_call.1} parent=1 // pred_check
      _
    $region27: #{tpu_custom_call.1} parent=1 // pred_check_branch
      %66 = sbr.rel (0) target = $region29
    $region28: #{tpu_custom_call.1} parent=1 // pred_region
      %67 = dma.done [#allocation6], 1024
    $region29: #{tpu_custom_call.1} parent=1 // pred_fallthru
      _
    // Predicated region
    $region30: #{tpu_custom_call.1} parent=1 // pred_check
      _
    $region31: #{tpu_custom_call.1} parent=1 // pred_check_branch
      %69 = sbr.rel (0) target = $region33
    $region32: #{tpu_custom_call.1} parent=1 // pred_region
      %70 = dma.done [#allocation9], 1024
    $region33: #{tpu_custom_call.1} parent=1 // pred_fallthru
      _
    %v71 = vld [vmem:[#allocation2] sm:$0xff]
    %v72 = vld [vmem:[#allocation5] sm:$0xff]
    %v73 = vld [vmem:[#allocation5 + $0x8] sm:$0xff]
    %v74 = vld [vmem:[#allocation5 + $0x10] sm:$0xff]
    %v75 = vld [vmem:[#allocation5 + $0x18] sm:$0xff]
    %v76 = vld [vmem:[#allocation5 + $0x20] sm:$0xff]
    %v77 = vld [vmem:[#allocation5 + $0x28] sm:$0xff]
    %v78 = vld [vmem:[#allocation5 + $0x30] sm:$0xff]
    %v79 = vld [vmem:[#allocation5 + $0x38] sm:$0xff]
    %v80 = vld [vmem:[#allocation7] sm:$0xff]
    %v81 = vld [vmem:[#allocation7 + $0x8] sm:$0xff]
    %v82 = vld [vmem:[#allocation7 + $0x10] sm:$0xff]
    %v83 = vld [vmem:[#allocation7 + $0x18] sm:$0xff]
    %v84 = vld [vmem:[#allocation7 + $0x20] sm:$0xff]
    %v85 = vld [vmem:[#allocation7 + $0x28] sm:$0xff]
    %v86 = vld [vmem:[#allocation7 + $0x30] sm:$0xff]
    %v87 = vld [vmem:[#allocation7 + $0x38] sm:$0xff]
    %v88 = vld [vmem:[#allocation8] sm:$0xff]
    %v89 = vld [vmem:[#allocation8 + $0x8] sm:$0xff]
    %v90 = vld [vmem:[#allocation8 + $0x10] sm:$0xff]
    %v91 = vld [vmem:[#allocation8 + $0x18] sm:$0xff]
    %v92 = vld [vmem:[#allocation8 + $0x20] sm:$0xff]
    %v93 = vld [vmem:[#allocation8 + $0x28] sm:$0xff]
    %v94 = vld [vmem:[#allocation8 + $0x30] sm:$0xff]
    %v95 = vld [vmem:[#allocation8 + $0x38] sm:$0xff]
    %97 = vset.pattern.permute.xlu0 0
    %98 = vperm.xlu0 %97, %v71
    %v99 = vpop.permute.xlu0 %98
    %v101 = vlaneseq
    %v102 = vshrl.u32 %v101, 7
    %v103 = vsub.s32 0, %v102
    %v104 = vrot.slane %v94, %v103
    %v105 = vmul.f32 %v99, %v104
    %106 = vset.pattern.permute.xlu0 1
    %107 = vperm.xlu0 %106, %v71
    %v108 = vpop.permute.xlu0 %107
    %v110 = vlaneseq
    %v111 = vshrl.u32 %v110, 7
    %v112 = vsub.s32 1, %v111
    %v113 = vrot.slane %v94, %v112
    %v114 = vmul.f32 %v108, %v113
    %v115 = vadd.f32 %v105, %v114
    %v116 = vlaneseq
    %v117 = vshrl.u32 %v116, 7
    %v118 = vsub.s32 5, %v117
    %v119 = vrot.slane %v94, %v118
    %v120 = vmul.f32 %v99, %v119
    %v121 = vlaneseq
    %v122 = vshrl.u32 %v121, 7
    %v123 = vsub.s32 6, %v122
    %v124 = vrot.slane %v94, %v123
    %v125 = vmul.f32 %v108, %v124
    %v126 = vadd.f32 %v120, %v125
    %v127 = vlaneseq
    %v128 = vshrl.u32 %v127, 7
    %v129 = vsub.s32 2, %v128
    %v130 = vrot.slane %v95, %v129
    %v131 = vadd.f32 %v126, %v130
    %133 = vset.pattern.permute.xlu0 0
    %134 = vperm.xlu0 %133, %v72
    %v135 = vpop.permute.xlu0 %134
    %138 = vset.pattern.permute.xlu0 0
    %139 = vperm.xlu0 %138, %v73
    %v140 = vpop.permute.xlu0 %139
    %143 = vset.pattern.permute.xlu0 0
    %144 = vperm.xlu0 %143, %v74
    %v145 = vpop.permute.xlu0 %144
    %148 = vset.pattern.permute.xlu0 0
    %149 = vperm.xlu0 %148, %v75
    %v150 = vpop.permute.xlu0 %149
    %153 = vset.pattern.permute.xlu0 0
    %154 = vperm.xlu0 %153, %v76
    %v155 = vpop.permute.xlu0 %154
    %158 = vset.pattern.permute.xlu0 0
    %159 = vperm.xlu0 %158, %v77
    %v160 = vpop.permute.xlu0 %159
    %163 = vset.pattern.permute.xlu0 0
    %164 = vperm.xlu0 %163, %v78
    %v165 = vpop.permute.xlu0 %164
    %168 = vset.pattern.permute.xlu0 0
    %169 = vperm.xlu0 %168, %v79
    %v170 = vpop.permute.xlu0 %169
    %v172 = vlaneseq
    %v173 = vshrl.u32 %v172, 7
    %v174 = vsub.s32 3, %v173
    %v175 = vrot.slane %v94, %v174
    %v176 = vmul.f32 %v135, %v175
    %v177 = vmul.f32 %v140, %v175
    %v178 = vmul.f32 %v145, %v175
    %v179 = vmul.f32 %v150, %v175
    %v180 = vmul.f32 %v155, %v175
    %v181 = vmul.f32 %v160, %v175
    %v182 = vmul.f32 %v165, %v175
    %v183 = vmul.f32 %v170, %v175
    %184 = vset.pattern.permute.xlu0 1
    %185 = vperm.xlu0 %184, %v72
    %v186 = vpop.permute.xlu0 %185
    %188 = vset.pattern.permute.xlu0 1
    %189 = vperm.xlu0 %188, %v73
    %v190 = vpop.permute.xlu0 %189
    %192 = vset.pattern.permute.xlu0 1
    %193 = vperm.xlu0 %192, %v74
    %v194 = vpop.permute.xlu0 %193
    %196 = vset.pattern.permute.xlu0 1
    %197 = vperm.xlu0 %196, %v75
    %v198 = vpop.permute.xlu0 %197
    %200 = vset.pattern.permute.xlu0 1
    %201 = vperm.xlu0 %200, %v76
    %v202 = vpop.permute.xlu0 %201
    %204 = vset.pattern.permute.xlu0 1
    %205 = vperm.xlu0 %204, %v77
    %v206 = vpop.permute.xlu0 %205
    %208 = vset.pattern.permute.xlu0 1
    %209 = vperm.xlu0 %208, %v78
    %v210 = vpop.permute.xlu0 %209
    %212 = vset.pattern.permute.xlu0 1
    %213 = vperm.xlu0 %212, %v79
    %v214 = vpop.permute.xlu0 %213
    %v216 = vlaneseq
    %v217 = vshrl.u32 %v216, 7
    %v218 = vsub.s32 4, %v217
    %v219 = vrot.slane %v94, %v218
    %v220 = vmul.f32 %v186, %v219
    %v221 = vmul.f32 %v190, %v219
    %v222 = vmul.f32 %v194, %v219
    %v223 = vmul.f32 %v198, %v219
    %v224 = vmul.f32 %v202, %v219
    %v225 = vmul.f32 %v206, %v219
    %v226 = vmul.f32 %v210, %v219
    %v227 = vmul.f32 %v214, %v219
    %v228 = vadd.f32 %v176, %v220
    %v229 = vadd.f32 %v177, %v221
    %v230 = vadd.f32 %v178, %v222
    %v231 = vadd.f32 %v179, %v223
    %v232 = vadd.f32 %v180, %v224
    %v233 = vadd.f32 %v181, %v225
    %v234 = vadd.f32 %v182, %v226
    %v235 = vadd.f32 %v183, %v227
    %v236 = vlaneseq
    %v237 = vshrl.u32 %v236, 7
    %v238 = vsub.s32 0, %v237
    %v239 = vrot.slane %v95, %v238
    %v240 = vadd.f32 %v228, %v239
    %v241 = vadd.f32 %v229, %v239
    %v242 = vadd.f32 %v230, %v239
    %v243 = vadd.f32 %v231, %v239
    %v244 = vadd.f32 %v232, %v239
    %v245 = vadd.f32 %v233, %v239
    %v246 = vadd.f32 %v234, %v239
    %v247 = vadd.f32 %v235, %v239
    %248 = vrot.lane.b32.xlu0 %v71, 126
    %v249 = vpop.permute.xlu0 %248
    loop: start=0, step=1, limit=3
    $region34: #{tpu_custom_call.1} parent=1 // loop_pre_header
      _
    $region35: #{tpu_custom_call.1} parent=1 // loop_header
      %s252 = sphi 0, %s256
      %p253 = scmp.ge.s32.totalorder %s252, 3
      %v257 = vphi %v249, %v673
    $region36: #{tpu_custom_call.1} parent=1 // loop_header_branch
      %255 = sbr.rel (%p253) target = $region40
    $region37: #{tpu_custom_call.1} parent=1 // loop_body
      %259 = vset.pattern.permute.xlu0 0
      %260 = vperm.xlu0 %259, %v257
      %v261 = vpop.permute.xlu0 %260
      %v263 = vlaneseq
      %v264 = vshrl.u32 %v263, 7
      %v265 = vsub.s32 2, %v264
      %v266 = vrot.slane %v94, %v265
      %v267 = vmul.f32 %v261, %v266
      %v268 = vadd.f32 %v115, %v267
      %v270 = vcombine.high %v268, %v268
      %v272 = vunpack.c.l.s4 1966171168
      %v273 = vunpack.c.0.s8 %v272
      %v274 = vlaneseq
      %v275 = vshrl.u32 %v274, 7
      %v276 = vsub.s32 %v273, %v275
      %v277 = vrot.slane %v268, %v276
      %v279 = vunpack.c.l.s4 1966171168
      %v280 = vunpack.c.0.s8 %v279
      %v281 = vlaneseq
      %v282 = vshrl.u32 %v281, 7
      %v283 = vsub.s32 %v280, %v282
      %v284 = vrot.slane %v270, %v283
      %v285 = vcombine.high %v277, %v277
      %v286 = vcombine.high %v284, %v284
      %v288 = vunpack.c.l.s4 1966171168
      %v289 = vunpack.c.0.s8 %v288
      %v290 = vlaneseq
      %v291 = vshrl.u32 %v290, 7
      %v292 = vsub.s32 %v289, %v291
      %v293 = vrot.slane %v277, %v292
      %v295 = vunpack.c.l.s4 1966171168
      %v296 = vunpack.c.0.s8 %v295
      %v297 = vlaneseq
      %v298 = vshrl.u32 %v297, 7
      %v299 = vsub.s32 %v296, %v298
      %v300 = vrot.slane %v284, %v299
      %v302 = vunpack.c.l.s4 1966171168
      %v303 = vunpack.c.0.s8 %v302
      %v304 = vlaneseq
      %v305 = vshrl.u32 %v304, 7
      %v306 = vsub.s32 %v303, %v305
      %v307 = vrot.slane %v285, %v306
      %v309 = vunpack.c.l.s4 1966171168
      %v310 = vunpack.c.0.s8 %v309
      %v311 = vlaneseq
      %v312 = vshrl.u32 %v311, 7
      %v313 = vsub.s32 %v310, %v312
      %v314 = vrot.slane %v286, %v313
      %v315 = vcombine.high %v293, %v293
      %v316 = vcombine.high %v300, %v300
      %v317 = vcombine.high %v307, %v307
      %v318 = vcombine.high %v314, %v314
      %v319 = vlaneseq
      %v320 = vshrl.u32 %v319, 7
      %v321 = vsub.s32 0, %v320
      %v322 = vrot.slane %v293, %v321
      %v323 = vlaneseq
      %v324 = vshrl.u32 %v323, 7
      %v325 = vsub.s32 0, %v324
      %v326 = vrot.slane %v307, %v325
      %v327 = vlaneseq
      %v328 = vshrl.u32 %v327, 7
      %v329 = vsub.s32 0, %v328
      %v330 = vrot.slane %v315, %v329
      %v331 = vlaneseq
      %v332 = vshrl.u32 %v331, 7
      %v333 = vsub.s32 0, %v332
      %v334 = vrot.slane %v317, %v333
      %v335 = vlaneseq
      %v336 = vshrl.u32 %v335, 7
      %v337 = vsub.s32 0, %v336
      %v338 = vrot.slane %v300, %v337
      %v339 = vlaneseq
      %v340 = vshrl.u32 %v339, 7
      %v341 = vsub.s32 0, %v340
      %v342 = vrot.slane %v314, %v341
      %v343 = vlaneseq
      %v344 = vshrl.u32 %v343, 7
      %v345 = vsub.s32 0, %v344
      %v346 = vrot.slane %v316, %v345
      %v347 = vlaneseq
      %v348 = vshrl.u32 %v347, 7
      %v349 = vsub.s32 0, %v348
      %v350 = vrot.slane %v318, %v349
      %v359 = vadd.f32 %v322, %v240
      %v360 = vadd.f32 %v326, %v241
      %v361 = vadd.f32 %v330, %v242
      %v362 = vadd.f32 %v334, %v243
      %v363 = vadd.f32 %v338, %v244
      %v364 = vadd.f32 %v342, %v245
      %v365 = vadd.f32 %v346, %v246
      %v366 = vadd.f32 %v350, %v247
      %v367 = vmax.f32 %v359, 0.0
      %v368 = vmax.f32 %v360, 0.0
      %v369 = vmax.f32 %v361, 0.0
      %v370 = vmax.f32 %v362, 0.0
      %v371 = vmax.f32 %v363, 0.0
      %v372 = vmax.f32 %v364, 0.0
      %v373 = vmax.f32 %v365, 0.0
      %v374 = vmax.f32 %v366, 0.0
      %v375 = vlaneseq
      %v376 = vshrl.u32 %v375, 7
      %v377 = vsub.s32 1, %v376
      %v378 = vrot.slane %v95, %v377
      %vm379 = vcmask 130048
      %v381 = vsel %vm379, %v367, 0
      %v384 = vsel %vm379, %v368, 0
      %v387 = vsel %vm379, %v369, 0
      %v390 = vsel %vm379, %v370, 0
      %v393 = vsel %vm379, %v371, 0
      %v396 = vsel %vm379, %v372, 0
      %v399 = vsel %vm379, %v373, 0
      %v402 = vsel %vm379, %v374, 0
      %404 = vmatprep.subr.mxu0 0.0
      %405 = vmatpush1.msra.mxu0 %v88
      %406 = vmatprep.subr.mxu0 0.0
      %407 = vmatpush1.msra.mxu0 %v89
      %408 = vmatprep.subr.mxu0 0.0
      %409 = vmatpush1.msra.mxu0 0.0
      %410 = vmatprep.subr.mxu0 0.0
      %411 = vmatpush1.msra.mxu0 0.0
      %412 = vmatprep.subr.mxu0 0.0
      %413 = vmatpush1.msra.mxu0 0.0
      %414 = vmatprep.subr.mxu0 0.0
      %415 = vmatpush1.msra.mxu0 0.0
      %416 = vmatprep.subr.mxu0 0.0
      %417 = vmatpush1.msra.mxu0 0.0
      %418 = vmatprep.subr.mxu0 0.0
      %419 = vmatpush1.msra.mxu0 0.0
      %420 = vmatprep.subr.mxu0 0.0
      %421 = vmatpush1.msra.mxu0 0.0
      %422 = vmatprep.subr.mxu0 0.0
      %423 = vmatpush1.msra.mxu0 0.0
      %424 = vmatprep.subr.mxu0 0.0
      %425 = vmatpush1.msra.mxu0 0.0
      %426 = vmatprep.subr.mxu0 0.0
      %427 = vmatpush1.msra.mxu0 0.0
      %428 = vmatprep.subr.mxu0 0.0
      %429 = vmatpush1.msra.mxu0 0.0
      %430 = vmatprep.subr.mxu0 0.0
      %431 = vmatpush1.msra.mxu0 0.0
      %432 = vmatprep.subr.mxu0 0.0
      %433 = vmatpush1.msra.mxu0 0.0
      %434 = vmatprep.subr.mxu0 0.0
      %435 = vmatpush1.msra.mxu0 0.0
      %436 = vmatprep.subr.mxu0 0.0
      %437 = vmatpush1.msra.mxu0 0.0
      %438 = vmatprep.subr.mxu0 0.0
      %439 = vmatpush1.msra.mxu0 0.0
      %440 = vmatprep.subr.mxu0 0.0
      %441 = vmatpush1.msra.mxu0 0.0
      %442 = vmatprep.subr.mxu0 0.0
      %443 = vmatpush1.msra.mxu0 0.0
      %444 = vmatprep.subr.mxu0 0.0
      %445 = vmatpush1.msra.mxu0 0.0
      %446 = vmatprep.subr.mxu0 0.0
      %447 = vmatpush1.msra.mxu0 0.0
      %448 = vmatprep.subr.mxu0 0.0
      %449 = vmatpush1.msra.mxu0 0.0
      %450 = vmatprep.subr.mxu0 0.0
      %451 = vmatpush1.msra.mxu0 0.0
      %452 = vmatprep.subr.mxu0 0.0
      %453 = vmatpush1.msra.mxu0 0.0
      %454 = vmatprep.subr.mxu0 0.0
      %455 = vmatpush1.msra.mxu0 0.0
      %456 = vmatprep.subr.mxu0 0.0
      %457 = vmatpush1.msra.mxu0 0.0
      %458 = vmatprep.subr.mxu0 0.0
      %459 = vmatpush1.msra.mxu0 0.0
      %460 = vmatprep.subr.mxu0 0.0
      %461 = vmatpush1.msra.mxu0 0.0
      %462 = vmatprep.subr.mxu0 0.0
      %463 = vmatpush1.msra.mxu0 0.0
      %464 = vmatprep.subr.mxu0 0.0
      %465 = vmatpush1.msra.mxu0 0.0
      %466 = vmatprep.subr.mxu0 0.0
      %467 = vmatpush1.msra.mxu0 0.0
      %468 = vmatprep.mubr.f32.mxu0 0.0
      %469 = vmatmul.mubr.f32.gmra.mrb[0].mxu0 %v381
      %v470 = vpop.f32.mrb[0].mxu0
      %v471 = vadd.f32 %v378, %v470
      %v472 = vpop.f32.mrb[0].mxu0
      %473 = vmatprep.mubr.f32.mxu0 0.0
      %474 = vmatmul.mubr.f32.gmra.mrb[0].mxu0 %v384
      %v475 = vpop.f32.mrb[0].mxu0
      %v476 = vadd.f32 %v378, %v475
      %v477 = vpop.f32.mrb[0].mxu0
      %478 = vmatprep.mubr.f32.mxu0 0.0
      %479 = vmatmul.mubr.f32.gmra.mrb[0].mxu0 %v387
      %v480 = vpop.f32.mrb[0].mxu0
      %v481 = vadd.f32 %v378, %v480
      %v482 = vpop.f32.mrb[0].mxu0
      %483 = vmatprep.mubr.f32.mxu0 0.0
      %484 = vmatmul.mubr.f32.gmra.mrb[0].mxu0 %v390
      %v485 = vpop.f32.mrb[0].mxu0
      %v486 = vadd.f32 %v378, %v485
      %v487 = vpop.f32.mrb[0].mxu0
      %488 = vmatprep.mubr.f32.mxu0 0.0
      %489 = vmatmul.mubr.f32.gmra.mrb[0].mxu0 %v393
      %v490 = vpop.f32.mrb[0].mxu0
      %v491 = vadd.f32 %v378, %v490
      %v492 = vpop.f32.mrb[0].mxu0
      %493 = vmatprep.mubr.f32.mxu0 0.0
      %494 = vmatmul.mubr.f32.gmra.mrb[0].mxu0 %v396
      %v495 = vpop.f32.mrb[0].mxu0
      %v496 = vadd.f32 %v378, %v495
      %v497 = vpop.f32.mrb[0].mxu0
      %498 = vmatprep.mubr.f32.mxu0 0.0
      %499 = vmatmul.mubr.f32.gmra.mrb[0].mxu0 %v399
      %v500 = vpop.f32.mrb[0].mxu0
      %v501 = vadd.f32 %v378, %v500
      %v502 = vpop.f32.mrb[0].mxu0
      %503 = vmatprep.mubr.f32.mxu0 0.0
      %504 = vmatmul.mubr.f32.gmra.mrb[0].mxu0 %v402
      %v505 = vpop.f32.mrb[0].mxu0
      %v506 = vadd.f32 %v378, %v505
      %v507 = vpop.f32.mrb[0].mxu0
      %508 = vdwg.mxu0
      %v509 = vmax.f32 %v471, 0.0
      %v510 = vmax.f32 %v476, 0.0
      %v511 = vmax.f32 %v481, 0.0
      %v512 = vmax.f32 %v486, 0.0
      %v513 = vmax.f32 %v491, 0.0
      %v514 = vmax.f32 %v496, 0.0
      %v515 = vmax.f32 %v501, 0.0
      %v516 = vmax.f32 %v506, 0.0
      %518 = vset.pattern.permute.xlu0 0
      %519 = vperm.xlu0 %518, %v80
      %v520 = vpop.permute.xlu0 %519
      %523 = vset.pattern.permute.xlu0 0
      %524 = vperm.xlu0 %523, %v81
      %v525 = vpop.permute.xlu0 %524
      %528 = vset.pattern.permute.xlu0 0
      %529 = vperm.xlu0 %528, %v82
      %v530 = vpop.permute.xlu0 %529
      %533 = vset.pattern.permute.xlu0 0
      %534 = vperm.xlu0 %533, %v83
      %v535 = vpop.permute.xlu0 %534
      %538 = vset.pattern.permute.xlu0 0
      %539 = vperm.xlu0 %538, %v84
      %v540 = vpop.permute.xlu0 %539
      %543 = vset.pattern.permute.xlu0 0
      %544 = vperm.xlu0 %543, %v85
      %v545 = vpop.permute.xlu0 %544
      %548 = vset.pattern.permute.xlu0 0
      %549 = vperm.xlu0 %548, %v86
      %v550 = vpop.permute.xlu0 %549
      %553 = vset.pattern.permute.xlu0 0
      %554 = vperm.xlu0 %553, %v87
      %v555 = vpop.permute.xlu0 %554
      %v557 = vmul.f32 %v509, %v520
      %v558 = vmul.f32 %v510, %v525
      %v559 = vmul.f32 %v511, %v530
      %v560 = vmul.f32 %v512, %v535
      %v561 = vmul.f32 %v513, %v540
      %v562 = vmul.f32 %v514, %v545
      %v563 = vmul.f32 %v515, %v550
      %v564 = vmul.f32 %v516, %v555
      %v565 = vmax.f32 %v557, 0.0
      %v566 = vmax.f32 %v565, %v558
      %v567 = vmax.f32 %v566, %v559
      %v568 = vmax.f32 %v567, %v560
      %v569 = vmax.f32 %v568, %v561
      %v570 = vmax.f32 %v569, %v562
      %v571 = vmax.f32 %v570, %v563
      %v572 = vmax.f32 %v571, %v564
      %v573 = vlaneseq
      %v574 = vshrl.u32 %v573, 7
      %v575 = vsub.s32 7, %v574
      %v576 = vrot.slane %v94, %v575
      %v577 = vmul.f32 %v261, %v576
      %v578 = vadd.f32 %v131, %v577
      %vm579 = vcmask 261120
      %v581 = vsel %vm579, %v572, 0
      %583 = vmatprep.subr.mxu0 0.0
      %584 = vmatpush1.msra.mxu0 %v90
      %585 = vmatprep.subr.mxu0 0.0
      %586 = vmatpush1.msra.mxu0 %v91
      %587 = vmatprep.subr.mxu0 0.0
      %588 = vmatpush1.msra.mxu0 %v92
      %589 = vmatprep.subr.mxu0 0.0
      %590 = vmatpush1.msra.mxu0 %v93
      %591 = vmatprep.subr.mxu0 0.0
      %592 = vmatpush1.msra.mxu0 0.0
      %593 = vmatprep.subr.mxu0 0.0
      %594 = vmatpush1.msra.mxu0 0.0
      %595 = vmatprep.subr.mxu0 0.0
      %596 = vmatpush1.msra.mxu0 0.0
      %597 = vmatprep.subr.mxu0 0.0
      %598 = vmatpush1.msra.mxu0 0.0
      %599 = vmatprep.subr.mxu0 0.0
      %600 = vmatpush1.msra.mxu0 0.0
      %601 = vmatprep.subr.mxu0 0.0
      %602 = vmatpush1.msra.mxu0 0.0
      %603 = vmatprep.subr.mxu0 0.0
      %604 = vmatpush1.msra.mxu0 0.0
      %605 = vmatprep.subr.mxu0 0.0
      %606 = vmatpush1.msra.mxu0 0.0
      %607 = vmatprep.subr.mxu0 0.0
      %608 = vmatpush1.msra.mxu0 0.0
      %609 = vmatprep.subr.mxu0 0.0
      %610 = vmatpush1.msra.mxu0 0.0
      %611 = vmatprep.subr.mxu0 0.0
      %612 = vmatpush1.msra.mxu0 0.0
      %613 = vmatprep.subr.mxu0 0.0
      %614 = vmatpush1.msra.mxu0 0.0
      %615 = vmatprep.subr.mxu0 0.0
      %616 = vmatpush1.msra.mxu0 0.0
      %617 = vmatprep.subr.mxu0 0.0
      %618 = vmatpush1.msra.mxu0 0.0
      %619 = vmatprep.subr.mxu0 0.0
      %620 = vmatpush1.msra.mxu0 0.0
      %621 = vmatprep.subr.mxu0 0.0
      %622 = vmatpush1.msra.mxu0 0.0
      %623 = vmatprep.subr.mxu0 0.0
      %624 = vmatpush1.msra.mxu0 0.0
      %625 = vmatprep.subr.mxu0 0.0
      %626 = vmatpush1.msra.mxu0 0.0
      %627 = vmatprep.subr.mxu0 0.0
      %628 = vmatpush1.msra.mxu0 0.0
      %629 = vmatprep.subr.mxu0 0.0
      %630 = vmatpush1.msra.mxu0 0.0
      %631 = vmatprep.subr.mxu0 0.0
      %632 = vmatpush1.msra.mxu0 0.0
      %633 = vmatprep.subr.mxu0 0.0
      %634 = vmatpush1.msra.mxu0 0.0
      %635 = vmatprep.subr.mxu0 0.0
      %636 = vmatpush1.msra.mxu0 0.0
      %637 = vmatprep.subr.mxu0 0.0
      %638 = vmatpush1.msra.mxu0 0.0
      %639 = vmatprep.subr.mxu0 0.0
      %640 = vmatpush1.msra.mxu0 0.0
      %641 = vmatprep.subr.mxu0 0.0
      %642 = vmatpush1.msra.mxu0 0.0
      %643 = vmatprep.subr.mxu0 0.0
      %644 = vmatpush1.msra.mxu0 0.0
      %645 = vmatprep.subr.mxu0 0.0
      %646 = vmatpush1.msra.mxu0 0.0
      %647 = vmatprep.mubr.f32.mxu0 0.0
      %648 = vmatmul.mubr.f32.gmra.mrb[0].mxu0 %v581
      %v649 = vpop.f32.mrb[0].mxu0
      %v650 = vadd.f32 0.0, %v649
      %v651 = vpop.f32.mrb[0].mxu0
      %652 = vdwg.mxu0
      %v653 = vadd.f32 %v578, %v650
      %v654 = vmax.f32 %v653, 0.0
      %v655 = vlaneseq
      %v656 = vshrl.u32 %v655, 7
      %v657 = vsub.s32 3, %v656
      %v658 = vrot.slane %v95, %v657
      %v659 = vmul.f32 %v654, %v658
      %v660 = vsel %vm379, %v659, 0.0
      %661 = vadd.xlane.f32.xlu0 %v660
      %v662 = vpop.xlane.xlu0 %661
      %v663 = vlaneseq
      %v664 = vshrl.u32 %v663, 7
      %v665 = vsub.s32 4, %v664
      %v666 = vrot.slane %v95, %v665
      %v667 = vadd.f32 %v662, %v666
      %v668 = vsub.f32 0.0, %v667
      %v669 = vmul.f32 %v668, 1.442695
      %v670 = vpow.pop %v669
      %v671 = vadd.f32 %v670, 1.0
      %v672 = vrcp.pop %v671
      %v673 = vmul.f32 1.0, %v672
    $region38: #{tpu_custom_call.1} parent=1 // loop_footer
      %s256 = sadd.s32 1, %s252
    $region39: #{tpu_custom_call.1} parent=1 // loop_footer_branch
      %251 = sbr.rel target = $region35
    $region40: #{tpu_custom_call.1} parent=1 // loop_exit
      _
    %v674 = vlaneseq
    %v675 = vand.u32 %v674, 127
    %vm676 = vcmp.lt.s32.totalorder %v675, 2
    %678 = vset.pattern.permute.xlu0 0
    %679 = vperm.xlu0 %678, %v257
    %v680 = vpop.permute.xlu0 %679
    %v682 = vsel %vm676, %v71, %v680
    %vm683 = vcmask 23552
    %684 = vst.msk [vmem:[#allocation10] sm:$0xff] %vm683, %v682
    // Predicated region
    $region41: #{tpu_custom_call.1} parent=1 // pred_check
      _
    $region42: #{tpu_custom_call.1} parent=1 // pred_check_branch
      %686 = sbr.rel (0) target = $region44
    $region43: #{tpu_custom_call.1} parent=1 // pred_region
      %s688 = ssub.s32 128, 128
      %689 = vsyncadd [#allocation4], %s688
      %s691 = sshll.u32 [#allocation10], 4
      %s692 = int_to_ptr.vmem [resolvable:$true] %s691
      %694 = dma.vmem_to_hbm [thread:$0]  %s692, 128, %s4, [#allocation4]
    $region44: #{tpu_custom_call.1} parent=1 // pred_fallthru
      _
    // Predicated region
    $region45: #{tpu_custom_call.1} parent=1 // pred_check
      _
    $region46: #{tpu_custom_call.1} parent=1 // pred_check_branch
      %696 = sbr.rel (0) target = $region48
    $region47: #{tpu_custom_call.1} parent=1 // pred_region
      %697 = dma.done [#allocation4], 128
    $region48: #{tpu_custom_call.1} parent=1 // pred_fallthru
      _
    %698 = vsyncpa [#allocation3], 1
    %699 = vsyncpa [#allocation6], 1
    %700 = vsyncpa [#allocation9], 1
    %701 = vsyncpa [#allocation4], 1

</llo_original>
